<compile_context>
chip_gen: v5e
topology: v5e:2x2
jax: 0.10.0
libtpu: 0.0.40
codegen_flags: <defaults>
</compile_context>

<pallas_src>
import functools
import math

import jax
import jax.numpy as jnp
from jax import lax
from jax.experimental import pallas as pl
from jax.experimental.pallas import tpu as pltpu


# ----------------------------------------------------------------------------
# Pallas kernel: one block of NB sequences -> im2col -> single MXU matmul
# ----------------------------------------------------------------------------
def fic_kernel(x_ref, w_ref, out_ref, xcol_ref, *, lout, stride, unroll_im2col):
    """
    x_ref   : (NB, T)          f32  block of the flattened (B*C, T) input
    x_ref   : (NB, T)          f32
    w_ref   : (2k, W)          f32  Fourier conv weight (PyTorch layout, squeezed)
    out_ref : (2k, Lout*NB)    f32  lane-dense output block (col = t*NB + r)
    xcol_ref: (Lout*NB, W)     f32  persistent im2col scratch in VMEM
    """
    nb = x_ref.shape[0]
    win = w_ref.shape[1]

    # ---- im2col: Lout contiguous window copies -------------------------------
    # Each copy is a full (NB, W) slab written at a sublane-aligned row offset
    # (NB is a multiple of 8 whenever B*C allows).  No strided access, no
    # gathers, no per-tap reshapes.
    if unroll_im2col:
        # Small Lout: fully static addressing (zero-cost ref views).
        for t in range(lout):
            xcol_ref[t * nb:(t + 1) * nb, :] = x_ref[:, t * stride:t * stride + win]
    else:
        # Large Lout: keep the loop visible to the scheduler instead of a huge
        # static unroll.
        def body(t, carry):
            row = pl.multiple_of(t * nb, nb)
            xcol_ref[pl.ds(row, nb), :] = x_ref[:, pl.ds(t * stride, win)]
            return carry
        lax.fori_loop(0, lout, body, 0)

    # ---- single MXU matmul: contraction over the whole window (W taps) -------
    # (2k, W) . (Lout*NB, W)^T -> (2k, Lout*NB): the large axis lands on lanes,
    # so the output store is unmasked/lane-dense.
    out_ref[...] = lax.dot_general(
        w_ref[...], xcol_ref[...],
        dimension_numbers=(((1,), (1,)), ((), ())),
        preferred_element_type=jnp.float32)


# ----------------------------------------------------------------------------
# Wrapper
# ----------------------------------------------------------------------------
def _row_block(bc):
    """Largest multiple-of-8 block (<= 64) that divides B*C, else B*C itself."""
    if bc % 8 != 0:
        return bc
    nb = 8
    while nb * 2 <= min(bc, 64) and bc % (nb * 2) == 0:
        nb *= 2
    return nb


def fic_forward_pallas(x, weight2d, stride):
    """FIC forward. x: (B, C, *spatial); weight2d: (2k, W). Returns (B, C, 2k, Lout)."""
    B, C = x.shape[0], x.shape[1]
    bc = B * C
    x2 = jnp.reshape(x, (bc, -1)).astype(jnp.float32)        # (B*C, T)
    t_len = x2.shape[1]
    two_k, win = weight2d.shape
    lout = (t_len - win) // stride + 1
    assert lout >= 1, "sequence shorter than the window"

    nb = _row_block(bc)
    n_blocks = bc // nb
    unroll_im2col = lout <= 128   # static unroll only for modest window counts

    out = pl.pallas_call(
        functools.partial(fic_kernel, lout=lout, stride=stride,
                          unroll_im2col=unroll_im2col),
        out_shape=jax.ShapeDtypeStruct((n_blocks, two_k, lout * nb),
                                       jnp.float32),
        grid_spec=pltpu.PrefetchScalarGridSpec(
            num_scalar_prefetch=0,
            grid=(n_blocks,),
            in_specs=[
                pl.BlockSpec((nb, t_len), lambda i: (i, 0)),      # input rows
                pl.BlockSpec((two_k, win), lambda i: (0, 0)),     # weight (kept resident)
            ],
            # leading grid dim squeezed out of the kernel view
            out_specs=pl.BlockSpec((None, two_k, lout * nb),
                                   lambda i: (i, 0, 0)),
            scratch_shapes=[pltpu.VMEM((lout * nb, win), jnp.float32)],
        ),
        compiler_params=pltpu.CompilerParams(
            dimension_semantics=("parallel",)),                   # v7x megacore
    )(x2, weight2d.astype(jnp.float32))

    # (n_blocks, 2k, Lout*NB) -> (B, C, 2k, Lout): wrapper-side layout plumbing.
    out = out.reshape(n_blocks, two_k, lout, nb)   # lane index was t*NB + r
    out = jnp.transpose(out, (0, 3, 1, 2))         # (G, NB, 2k, Lout)
    return out.reshape(B, C, two_k, lout)


# ----------------------------------------------------------------------------
# Deterministic Fourier weight (mirrors FIC.init())
# ----------------------------------------------------------------------------
def fourier_conv_weight(window_size):
    k = window_size // 2
    j = jnp.arange(window_size, dtype=jnp.float32)
    basis = 2.0 * math.pi * j / window_size
    rows = []
    for i in range(2 * k):
        f = float(i // 2 + 1)
        rows.append(jnp.cos(f * basis) if i % 2 == 0 else jnp.sin(-f * basis))
    return jnp.stack(rows, axis=0)                 # (2k, W)


# ----------------------------------------------------------------------------
# Pure-JAX reference (independent: lax.conv_general_dilated)
# ----------------------------------------------------------------------------
def fic_forward_ref(x, weight2d, stride):
    B, C = x.shape[0], x.shape[1]
    x2 = jnp.reshape(x, (B * C, 1, -1)).astype(jnp.float32)   # (B*C, 1, T)
    w3 = weight2d[:, None, :]                                  # (2k, 1, W) OIH
    y = jax.lax.conv_general_dilated(
        x2, w3, window_strides=(stride,), padding=[(0, 0)],
        dimension_numbers=("NCH", "OIH", "NCH"))               # (B*C, 2k, Lout)
    return jnp.reshape(y, (B, C, weight2d.shape[0], y.shape[-1]))


if __name__ == "__main__":
    # x is (B, C, H, W_spatial); the forward flattens everything after the
    # channel dim into one 1-D sequence of length T = H * W_spatial = 64.
    B, C, H, Wsp = 2, 4, 8, 8
    window_size, stride = 16, 4        # 2k = 16 output channels, Lout = 13

    key = jax.random.PRNGKey(0)
    x = jax.random.normal(key, (B, C, H, Wsp), jnp.float32)
    weight2d = fourier_conv_weight(window_size)   # deterministic Fourier init

    out = fic_forward_pallas(x, weight2d, stride)
    out = jax.block_until_ready(out)

    ref = fic_forward_ref(x, weight2d, stride)
    ref = jax.block_until_ready(ref)

    t_len = H * Wsp
    lout = (t_len - window_size) // stride + 1
    assert out.shape == (B, C, 2 * (window_size // 2), lout), out.shape
    assert jnp.allclose(out, ref, rtol=1e-4, atol=1e-4), (
        float(jnp.max(jnp.abs(out - ref))))

    print("KERNEL_OK")
</pallas_src>

<mosaic_0001>
module attributes {stable_mosaic.version = 11 : i64} {
  func.func @fic_kernel(%arg0: i32, %arg1: memref<8x64xf32, #tpu.memory_space<vmem>>, %arg2: memref<16x16xf32, #tpu.memory_space<vmem>>, %arg3: memref<1x16x104xf32, #tpu.memory_space<vmem>>, %arg4: memref<104x16xf32, #tpu.memory_space<vmem>>) attributes {dimension_semantics = [#tpu.dimension_semantics<parallel>], iteration_bounds = array<i64: 1>, scalar_prefetch = 0 : i64, scratch_operands = 1 : i64, tpu.core_type = #tpu.core_type<tc>, window_params = [{transform_indices = @transform_0, window_bounds = array<i64: 8, 64>}, {pipeline_mode = #tpu.pipeline_mode<synchronous>, transform_indices = @transform_1, window_bounds = array<i64: 16, 16>}, {transform_indices = @transform_2, window_bounds = array<i64: 1, 16, 104>}]} {
    %c0 = arith.constant 0 : index
    %c0_0 = arith.constant 0 : index
    %0 = vector.load %arg1[%c0, %c0_0] : memref<8x64xf32, #tpu.memory_space<vmem>>, vector<8x16xf32>
    %c0_1 = arith.constant 0 : index
    %c0_2 = arith.constant 0 : index
    %1 = vector.load %arg4[%c0_1, %c0_2] : memref<104x16xf32, #tpu.memory_space<vmem>>, vector<8x16xf32>
    tpu.vector_store %arg4[%c0_1, %c0_2], %0 {strides = array<i32>} : memref<104x16xf32, #tpu.memory_space<vmem>>, vector<8x16xf32>,
    %c0_3 = arith.constant 0 : index
    %c4 = arith.constant 4 : index
    %2 = vector.load %arg1[%c0_3, %c4] : memref<8x64xf32, #tpu.memory_space<vmem>>, vector<8x16xf32>
    %c8 = arith.constant 8 : index
    %c0_4 = arith.constant 0 : index
    %3 = vector.load %arg4[%c8, %c0_4] : memref<104x16xf32, #tpu.memory_space<vmem>>, vector<8x16xf32>
    tpu.vector_store %arg4[%c8, %c0_4], %2 {strides = array<i32>} : memref<104x16xf32, #tpu.memory_space<vmem>>, vector<8x16xf32>,
    %c0_5 = arith.constant 0 : index
    %c8_6 = arith.constant 8 : index
    %4 = vector.load %arg1[%c0_5, %c8_6] : memref<8x64xf32, #tpu.memory_space<vmem>>, vector<8x16xf32>
    %c16 = arith.constant 16 : index
    %c0_7 = arith.constant 0 : index
    %5 = vector.load %arg4[%c16, %c0_7] : memref<104x16xf32, #tpu.memory_space<vmem>>, vector<8x16xf32>
    tpu.vector_store %arg4[%c16, %c0_7], %4 {strides = array<i32>} : memref<104x16xf32, #tpu.memory_space<vmem>>, vector<8x16xf32>,
    %c0_8 = arith.constant 0 : index
    %c12 = arith.constant 12 : index
    %6 = vector.load %arg1[%c0_8, %c12] : memref<8x64xf32, #tpu.memory_space<vmem>>, vector<8x16xf32>
    %c24 = arith.constant 24 : index
    %c0_9 = arith.constant 0 : index
    %7 = vector.load %arg4[%c24, %c0_9] : memref<104x16xf32, #tpu.memory_space<vmem>>, vector<8x16xf32>
    tpu.vector_store %arg4[%c24, %c0_9], %6 {strides = array<i32>} : memref<104x16xf32, #tpu.memory_space<vmem>>, vector<8x16xf32>,
    %c0_10 = arith.constant 0 : index
    %c16_11 = arith.constant 16 : index
    %8 = vector.load %arg1[%c0_10, %c16_11] : memref<8x64xf32, #tpu.memory_space<vmem>>, vector<8x16xf32>
    %c32 = arith.constant 32 : index
    %c0_12 = arith.constant 0 : index
    %9 = vector.load %arg4[%c32, %c0_12] : memref<104x16xf32, #tpu.memory_space<vmem>>, vector<8x16xf32>
    tpu.vector_store %arg4[%c32, %c0_12], %8 {strides = array<i32>} : memref<104x16xf32, #tpu.memory_space<vmem>>, vector<8x16xf32>,
    %c0_13 = arith.constant 0 : index
    %c20 = arith.constant 20 : index
    %10 = vector.load %arg1[%c0_13, %c20] : memref<8x64xf32, #tpu.memory_space<vmem>>, vector<8x16xf32>
    %c40 = arith.constant 40 : index
    %c0_14 = arith.constant 0 : index
    %11 = vector.load %arg4[%c40, %c0_14] : memref<104x16xf32, #tpu.memory_space<vmem>>, vector<8x16xf32>
    tpu.vector_store %arg4[%c40, %c0_14], %10 {strides = array<i32>} : memref<104x16xf32, #tpu.memory_space<vmem>>, vector<8x16xf32>,
    %c0_15 = arith.constant 0 : index
    %c24_16 = arith.constant 24 : index
    %12 = vector.load %arg1[%c0_15, %c24_16] : memref<8x64xf32, #tpu.memory_space<vmem>>, vector<8x16xf32>
    %c48 = arith.constant 48 : index
    %c0_17 = arith.constant 0 : index
    %13 = vector.load %arg4[%c48, %c0_17] : memref<104x16xf32, #tpu.memory_space<vmem>>, vector<8x16xf32>
    tpu.vector_store %arg4[%c48, %c0_17], %12 {strides = array<i32>} : memref<104x16xf32, #tpu.memory_space<vmem>>, vector<8x16xf32>,
    %c0_18 = arith.constant 0 : index
    %c28 = arith.constant 28 : index
    %14 = vector.load %arg1[%c0_18, %c28] : memref<8x64xf32, #tpu.memory_space<vmem>>, vector<8x16xf32>
    %c56 = arith.constant 56 : index
    %c0_19 = arith.constant 0 : index
    %15 = vector.load %arg4[%c56, %c0_19] : memref<104x16xf32, #tpu.memory_space<vmem>>, vector<8x16xf32>
    tpu.vector_store %arg4[%c56, %c0_19], %14 {strides = array<i32>} : memref<104x16xf32, #tpu.memory_space<vmem>>, vector<8x16xf32>,
    %c0_20 = arith.constant 0 : index
    %c32_21 = arith.constant 32 : index
    %16 = vector.load %arg1[%c0_20, %c32_21] : memref<8x64xf32, #tpu.memory_space<vmem>>, vector<8x16xf32>
    %c64 = arith.constant 64 : index
    %c0_22 = arith.constant 0 : index
    %17 = vector.load %arg4[%c64, %c0_22] : memref<104x16xf32, #tpu.memory_space<vmem>>, vector<8x16xf32>
    tpu.vector_store %arg4[%c64, %c0_22], %16 {strides = array<i32>} : memref<104x16xf32, #tpu.memory_space<vmem>>, vector<8x16xf32>,
    %c0_23 = arith.constant 0 : index
    %c36 = arith.constant 36 : index
    %18 = vector.load %arg1[%c0_23, %c36] : memref<8x64xf32, #tpu.memory_space<vmem>>, vector<8x16xf32>
    %c72 = arith.constant 72 : index
    %c0_24 = arith.constant 0 : index
    %19 = vector.load %arg4[%c72, %c0_24] : memref<104x16xf32, #tpu.memory_space<vmem>>, vector<8x16xf32>
    tpu.vector_store %arg4[%c72, %c0_24], %18 {strides = array<i32>} : memref<104x16xf32, #tpu.memory_space<vmem>>, vector<8x16xf32>,
    %c0_25 = arith.constant 0 : index
    %c40_26 = arith.constant 40 : index
    %20 = vector.load %arg1[%c0_25, %c40_26] : memref<8x64xf32, #tpu.memory_space<vmem>>, vector<8x16xf32>
    %c80 = arith.constant 80 : index
    %c0_27 = arith.constant 0 : index
    %21 = vector.load %arg4[%c80, %c0_27] : memref<104x16xf32, #tpu.memory_space<vmem>>, vector<8x16xf32>
    tpu.vector_store %arg4[%c80, %c0_27], %20 {strides = array<i32>} : memref<104x16xf32, #tpu.memory_space<vmem>>, vector<8x16xf32>,
    %c0_28 = arith.constant 0 : index
    %c44 = arith.constant 44 : index
    %22 = vector.load %arg1[%c0_28, %c44] : memref<8x64xf32, #tpu.memory_space<vmem>>, vector<8x16xf32>
    %c88 = arith.constant 88 : index
    %c0_29 = arith.constant 0 : index
    %23 = vector.load %arg4[%c88, %c0_29] : memref<104x16xf32, #tpu.memory_space<vmem>>, vector<8x16xf32>
    tpu.vector_store %arg4[%c88, %c0_29], %22 {strides = array<i32>} : memref<104x16xf32, #tpu.memory_space<vmem>>, vector<8x16xf32>,
    %c0_30 = arith.constant 0 : index
    %c48_31 = arith.constant 48 : index
    %24 = vector.load %arg1[%c0_30, %c48_31] : memref<8x64xf32, #tpu.memory_space<vmem>>, vector<8x16xf32>
    %c96 = arith.constant 96 : index
    %c0_32 = arith.constant 0 : index
    %25 = vector.load %arg4[%c96, %c0_32] : memref<104x16xf32, #tpu.memory_space<vmem>>, vector<8x16xf32>
    tpu.vector_store %arg4[%c96, %c0_32], %24 {strides = array<i32>} : memref<104x16xf32, #tpu.memory_space<vmem>>, vector<8x16xf32>,
    %c0_33 = arith.constant 0 : index
    %c0_34 = arith.constant 0 : index
    %26 = vector.load %arg2[%c0_33, %c0_34] : memref<16x16xf32, #tpu.memory_space<vmem>>, vector<16x16xf32>
    %c0_35 = arith.constant 0 : index
    %c0_36 = arith.constant 0 : index
    %27 = vector.load %arg4[%c0_35, %c0_36] : memref<104x16xf32, #tpu.memory_space<vmem>>, vector<104x16xf32>
    %cst = arith.constant dense<0.000000e+00> : vector<16x104xf32>
    %28 = tpu.matmul %26, %27, %cst {dimension_numbers = #tpu.dot_dimension_numbers<[1], [1], [0], [0], [0, 0, 1, 0], [], []>} : vector<16x16xf32>, vector<104x16xf32>, vector<16x104xf32> -> vector<16x104xf32>
    %c0_37 = arith.constant 0 : index
    %c0_38 = arith.constant 0 : index
    %c0_39 = arith.constant 0 : index
    %29 = vector.load %arg3[%c0_37, %c0_38, %c0_39] : memref<1x16x104xf32, #tpu.memory_space<vmem>>, vector<1x16x104xf32>
    %30 = vector.shape_cast %29 : vector<1x16x104xf32> to vector<16x104xf32>
    %31 = vector.shape_cast %28 : vector<16x104xf32> to vector<1x16x104xf32>
    tpu.vector_store %arg3[%c0_37, %c0_38, %c0_39], %31 {strides = array<i32>} : memref<1x16x104xf32, #tpu.memory_space<vmem>>, vector<1x16x104xf32>,
    return
  }
  func.func @transform_0(%arg0: i32) -> (i32, i32) {
    %c0_i32 = arith.constant 0 : i32
    %c0_i32_0 = arith.constant 0 : i32
    return %arg0, %c0_i32 : i32, i32
  }
  func.func @transform_1(%arg0: i32) -> (i32, i32) {
    %c0_i32 = arith.constant 0 : i32
    %c0_i32_0 = arith.constant 0 : i32
    %c0_i32_1 = arith.constant 0 : i32
    return %c0_i32, %c0_i32_0 : i32, i32
  }
  func.func @transform_2(%arg0: i32) -> (i32, i32, i32) {
    %c0_i32 = arith.constant 0 : i32
    %c0_i32_0 = arith.constant 0 : i32
    %c0_i32_1 = arith.constant 0 : i32
    return %arg0, %c0_i32, %c0_i32_0 : i32, i32, i32
  }
}

</mosaic_0001>

<llo_original>
// kernel: tpu_custom_call.1
$region0: #{tpu_custom_call.1}
  #allocation0 [shape = 'u32[]', space=smem, size = 0x4, offset = 0x4, fixed_abs, tag = 'smem constant byte address 0x4 - core index']
  #allocation1 [shape = 'u32[72,128]{1,0:T(1,128)}', space=vmem, size = 0x9000, scoped, tag = 'internal scratch']
  #allocation2 [shape = 'f32[104,16]{1,0:T(8,128)}', space=vmem, size = 0xd000, scoped, tag = 'scratch operand']
  %s0 = inlined_call_operand.hbm [shape: f32[8,64], index: 0, kind: input, shape index: {}]
  %s1 = inlined_call_operand.hbm [shape: f32[16,16], index: 1, kind: input, shape index: {}]
  %s2 = inlined_call_operand.hbm [shape: f32[1,16,104], index: 2, kind: output, shape index: {}]
  %s3 = sld [smem:[#allocation0]]
  $region26: #{tpu_custom_call.1} parent=0
    _
  %s5 = ssub.s32 1, %s3
  %s6 = scalar_select 0, %s5, %s3
  $region1: #{tpu_custom_call.1} parent=0
    #allocation3 [shape = 'u8[4096]{0}', space=vmem, size = 0x1000, scoped, tag = 'input window, operand 0, single buffered']
    #allocation4 [shape = 's32[1]{0}', space=sflag, size = 0x4, scoped, tag = 'scoped memory for tpu_custom_call.1']
    #allocation5 [shape = 's32[1]{0}', space=sflag, size = 0x4, scoped, tag = 'scoped memory for tpu_custom_call.1']
    #allocation6 [shape = 'u8[8192]{0}', space=vmem, size = 0x2000, scoped, tag = 'input window, operand 1, single buffered']
    #allocation7 [shape = 's32[1]{0}', space=sflag, size = 0x4, scoped, tag = 'scoped memory for tpu_custom_call.1']
    #allocation8 [shape = 'u8[8192]{0}', space=vmem, size = 0x2000, scoped, tag = 'output window, operand 0, single buffered']
    %7 = vsyncpa [#allocation4], 0
    %8 = vsyncpa [#allocation7], 0
    %9 = vsyncpa [#allocation5], 0
    // Predicated region
    $region2: #{tpu_custom_call.1} parent=1 // pred_check
      _
    $region3: #{tpu_custom_call.1} parent=1 // pred_check_branch
      %11 = sbr.rel (0) target = $region5
    $region4: #{tpu_custom_call.1} parent=1 // pred_region
      %13 = vsyncadd [#allocation4], 0
      %s15 = sshll.u32 %s0, 4
      %s16 = int_to_ptr.hbm [resolvable:$true] %s15
      %s17 = sshll.u32 [#allocation3], 4
      %s18 = int_to_ptr.vmem [resolvable:$true] %s17
      %20 = dma.hbm_to_vmem [thread:$0]  %s16, 128, %s18, [#allocation4]
    $region5: #{tpu_custom_call.1} parent=1 // pred_fallthru
      _
    // Predicated region
    $region6: #{tpu_custom_call.1} parent=1 // pred_check
      _
    $region7: #{tpu_custom_call.1} parent=1 // pred_check_branch
      %22 = sbr.rel (0) target = $region9
    $region8: #{tpu_custom_call.1} parent=1 // pred_region
      %24 = vsyncadd [#allocation7], 0
      %s25 = sshll.u32 %s1, 4
      %s26 = int_to_ptr.hbm [resolvable:$true] %s25
      %s27 = sshll.u32 [#allocation6], 4
      %s28 = int_to_ptr.vmem [resolvable:$true] %s27
      %33 = dma.hbm_to_vmem [thread:$0]  %s26, 256, %s28, [#allocation7], 128, 128, 8
    $region9: #{tpu_custom_call.1} parent=1 // pred_fallthru
      _
    // Predicated region
    $region10: #{tpu_custom_call.1} parent=1 // pred_check
      _
    $region11: #{tpu_custom_call.1} parent=1 // pred_check_branch
      %35 = sbr.rel (0) target = $region13
    $region12: #{tpu_custom_call.1} parent=1 // pred_region
      %37 = dma.done [#allocation4], 128
    $region13: #{tpu_custom_call.1} parent=1 // pred_fallthru
      _
    // Predicated region
    $region14: #{tpu_custom_call.1} parent=1 // pred_check
      _
    $region15: #{tpu_custom_call.1} parent=1 // pred_check_branch
      %39 = sbr.rel (0) target = $region17
    $region16: #{tpu_custom_call.1} parent=1 // pred_region
      %41 = dma.done [#allocation7], 256
    $region17: #{tpu_custom_call.1} parent=1 // pred_fallthru
      _
    %v42 = vld [vmem:[#allocation3] sm:$0xff]
    %vm43 = vcmask 130048
    %44 = vst.msk [vmem:[#allocation2] sm:$0xff] %vm43, %v42
    %v45 = vld [vmem:[#allocation3] sm:$0xff]
    %47 = vrot.lane.b32.xlu0 %v45, 124
    %v48 = vpop.permute.xlu0 %47
    %50 = vst.msk [vmem:[#allocation2 + $0x8] sm:$0xff] %vm43, %v48
    %v51 = vld [vmem:[#allocation3] sm:$0xff]
    %53 = vrot.lane.b32.xlu0 %v51, 120
    %v54 = vpop.permute.xlu0 %53
    %56 = vst.msk [vmem:[#allocation2 + $0x10] sm:$0xff] %vm43, %v54
    %v57 = vld [vmem:[#allocation3] sm:$0xff]
    %59 = vrot.lane.b32.xlu0 %v57, 116
    %v60 = vpop.permute.xlu0 %59
    %62 = vst.msk [vmem:[#allocation2 + $0x18] sm:$0xff] %vm43, %v60
    %v63 = vld [vmem:[#allocation3] sm:$0xff]
    %65 = vrot.lane.b32.xlu0 %v63, 112
    %v66 = vpop.permute.xlu0 %65
    %68 = vst.msk [vmem:[#allocation2 + $0x20] sm:$0xff] %vm43, %v66
    %v69 = vld [vmem:[#allocation3] sm:$0xff]
    %71 = vrot.lane.b32.xlu0 %v69, 108
    %v72 = vpop.permute.xlu0 %71
    %74 = vst.msk [vmem:[#allocation2 + $0x28] sm:$0xff] %vm43, %v72
    %v75 = vld [vmem:[#allocation3] sm:$0xff]
    %77 = vrot.lane.b32.xlu0 %v75, 104
    %v78 = vpop.permute.xlu0 %77
    %80 = vst.msk [vmem:[#allocation2 + $0x30] sm:$0xff] %vm43, %v78
    %v81 = vld [vmem:[#allocation3] sm:$0xff]
    %83 = vrot.lane.b32.xlu0 %v81, 100
    %v84 = vpop.permute.xlu0 %83
    %86 = vst.msk [vmem:[#allocation2 + $0x38] sm:$0xff] %vm43, %v84
    %v87 = vld [vmem:[#allocation3] sm:$0xff]
    %89 = vrot.lane.b32.xlu0 %v87, 96
    %v90 = vpop.permute.xlu0 %89
    %92 = vst.msk [vmem:[#allocation2 + $0x40] sm:$0xff] %vm43, %v90
    %v93 = vld [vmem:[#allocation3] sm:$0xff]
    %95 = vrot.lane.b32.xlu0 %v93, 92
    %v96 = vpop.permute.xlu0 %95
    %98 = vst.msk [vmem:[#allocation2 + $0x48] sm:$0xff] %vm43, %v96
    %v99 = vld [vmem:[#allocation3] sm:$0xff]
    %101 = vrot.lane.b32.xlu0 %v99, 88
    %v102 = vpop.permute.xlu0 %101
    %104 = vst.msk [vmem:[#allocation2 + $0x50] sm:$0xff] %vm43, %v102
    %v105 = vld [vmem:[#allocation3] sm:$0xff]
    %107 = vrot.lane.b32.xlu0 %v105, 84
    %v108 = vpop.permute.xlu0 %107
    %110 = vst.msk [vmem:[#allocation2 + $0x58] sm:$0xff] %vm43, %v108
    %v111 = vld [vmem:[#allocation3] sm:$0xff]
    %113 = vrot.lane.b32.xlu0 %v111, 80
    %v114 = vpop.permute.xlu0 %113
    %116 = vst.msk [vmem:[#allocation2 + $0x60] sm:$0xff] %vm43, %v114
    %v117 = vld [vmem:[#allocation6] sm:$0xff]
    %v118 = vld [vmem:[#allocation6 + $0x8] sm:$0xff]
    %v119 = vld [vmem:[#allocation2] sm:$0xff]
    %v120 = vld [vmem:[#allocation2 + $0x8] sm:$0xff]
    %v121 = vld [vmem:[#allocation2 + $0x10] sm:$0xff]
    %v122 = vld [vmem:[#allocation2 + $0x18] sm:$0xff]
    %v123 = vld [vmem:[#allocation2 + $0x20] sm:$0xff]
    %v124 = vld [vmem:[#allocation2 + $0x28] sm:$0xff]
    %v125 = vld [vmem:[#allocation2 + $0x30] sm:$0xff]
    %v126 = vld [vmem:[#allocation2 + $0x38] sm:$0xff]
    %v127 = vld [vmem:[#allocation2 + $0x40] sm:$0xff]
    %v128 = vld [vmem:[#allocation2 + $0x48] sm:$0xff]
    %v129 = vld [vmem:[#allocation2 + $0x50] sm:$0xff]
    %v130 = vld [vmem:[#allocation2 + $0x58] sm:$0xff]
    %v131 = vld [vmem:[#allocation2 + $0x60] sm:$0xff]
    %v133 = vsel %vm43, %v117, 0
    %v136 = vsel %vm43, %v118, 0
    %v139 = vsel %vm43, %v119, 0
    %v142 = vsel %vm43, %v120, 0
    %v145 = vsel %vm43, %v121, 0
    %v148 = vsel %vm43, %v122, 0
    %v151 = vsel %vm43, %v123, 0
    %v154 = vsel %vm43, %v124, 0
    %v157 = vsel %vm43, %v125, 0
    %v160 = vsel %vm43, %v126, 0
    %v163 = vsel %vm43, %v127, 0
    %v166 = vsel %vm43, %v128, 0
    %v169 = vsel %vm43, %v129, 0
    %v172 = vsel %vm43, %v130, 0
    %v175 = vsel %vm43, %v131, 0
    %177 = vmatpush.xpose.msra.mxu0 0.0
    %178 = vmatpush.xpose.msra.mxu0 0.0
    %179 = vmatpush.xpose.msra.mxu0 0.0
    %180 = vmatpush.xpose.msra.mxu0 %v175
    %181 = vmatpush.xpose.msra.mxu0 %v172
    %182 = vmatpush.xpose.msra.mxu0 %v169
    %183 = vmatpush.xpose.msra.mxu0 %v166
    %184 = vmatpush.xpose.msra.mxu0 %v163
    %185 = vmatpush.xpose.msra.mxu0 %v160
    %186 = vmatpush.xpose.msra.mxu0 %v157
    %187 = vmatpush.xpose.msra.mxu0 %v154
    %188 = vmatpush.xpose.msra.mxu0 %v151
    %189 = vmatpush.xpose.msra.mxu0 %v148
    %190 = vmatpush.xpose.msra.mxu0 %v145
    %191 = vmatpush.xpose.msra.mxu0 %v142
    %192 = vmatpush.xpose.msra.mxu0 %v139
    %193 = vmatmul.f32.gmra.mxu0 %v133
    %v194 = vpop.f32.mrf.mxu0
    %v195 = vadd.f32 0.0, %v194
    %196 = vmatmul.f32.gmra.mxu0 %v136
    %v197 = vpop.f32.mrf.mxu0
    %v198 = vadd.f32 0.0, %v197
    %199 = vdwg.mxu0
    %vm200 = vcmask 850944
    %201 = vst.msk [vmem:[#allocation8] sm:$0xff] %vm200, %v195
    %202 = vst.msk [vmem:[#allocation8 + $0x8] sm:$0xff] %vm200, %v198
    // Predicated region
    $region18: #{tpu_custom_call.1} parent=1 // pred_check
      _
    $region19: #{tpu_custom_call.1} parent=1 // pred_check_branch
      %204 = sbr.rel (0) target = $region21
    $region20: #{tpu_custom_call.1} parent=1 // pred_region
      %206 = vsyncadd [#allocation5], 0
      %s207 = sshll.u32 [#allocation8], 4
      %s208 = int_to_ptr.vmem [resolvable:$true] %s207
      %s209 = sshll.u32 %s2, 4
      %s210 = int_to_ptr.hbm [resolvable:$true] %s209
      %215 = dma.vmem_to_hbm [thread:$0]  %s208, 256, %s210, [#allocation5], 128, 128, 8
    $region21: #{tpu_custom_call.1} parent=1 // pred_fallthru
      _
    // Predicated region
    $region22: #{tpu_custom_call.1} parent=1 // pred_check
      _
    $region23: #{tpu_custom_call.1} parent=1 // pred_check_branch
      %217 = sbr.rel (0) target = $region25
    $region24: #{tpu_custom_call.1} parent=1 // pred_region
      %219 = dma.done [#allocation5], 256
    $region25: #{tpu_custom_call.1} parent=1 // pred_fallthru
      _
    %220 = vsyncpa [#allocation4], 1
    %221 = vsyncpa [#allocation7], 1
    %222 = vsyncpa [#allocation5], 1

</llo_original>
